<compile_context>
chip_gen: v6e
topology: v6e:2x2x1
jax: 0.10.0
libtpu: 0.0.40
codegen_flags: <defaults>
</compile_context>

<pallas_src>
import jax
import jax.numpy as jnp
from jax.experimental import pallas as pl
from jax.experimental.pallas import tpu as pltpu

_LANE = 128     # vreg lane width
_SUBLANE = 8    # f32 sublane count


def _round_up(n, m):
    return ((n + m - 1) // m) * m


def _pick_vmem_limit(requested_bytes):
    """Per-generation VMEM budget: ~75% of physical capacity (headroom for
    internal scratch / spills), capped at 100 MiB; falls back to a v7x-safe
    48 MiB if the hardware query is unavailable."""
    try:
        capacity = pltpu.get_tpu_info().vmem_capacity_bytes  # 128 MiB v5e/v6e, 64 MiB v7x
    except Exception:
        capacity = 64 << 20
    budget = min(int(capacity * 3 // 4), 100 << 20)
    return int(min(max(requested_bytes, 4 << 20), budget))


# --------------------------------------------------------------------------
# Kernel body: both matmuls on the MXU (f32 accumulation), bias + ReLU on VPU.
# --------------------------------------------------------------------------
def mlp_kernel(x_ref, w1_ref, b1_ref, w2_ref, b2_ref, o_ref):
    # fc1: (tb, In) @ (In, H)
    h = jnp.dot(x_ref[...], w1_ref[...], preferred_element_type=jnp.float32)
    h = jnp.maximum(h + b1_ref[...], 0.0)                 # f32 bias + ReLU
    # fc2: (tb, H) @ (H, Out_p)
    y = jnp.dot(h.astype(w2_ref.dtype), w2_ref[...],
                preferred_element_type=jnp.float32)
    o_ref[...] = (y + b2_ref[...]).astype(o_ref.dtype)


def _build_call(*, grid_steps, block_batch, In, H, Out_p, B_p, out_dtype,
                vmem_limit, single_buffer_weights):
    inv_map = lambda i: (0, 0)   # grid-invariant blocks (weights / biases)
    w_kw = dict(pipeline_mode=pl.Buffered(1)) if single_buffer_weights else {}
    return pl.pallas_call(
        mlp_kernel,
        out_shape=jax.ShapeDtypeStruct((B_p, Out_p), out_dtype),
        grid_spec=pltpu.PrefetchScalarGridSpec(
            num_scalar_prefetch=0,
            grid=(grid_steps,),
            in_specs=[
                pl.BlockSpec((block_batch, In), lambda i: (i, 0)),
                pl.BlockSpec((In, H), inv_map, **w_kw),
                pl.BlockSpec((1, H), inv_map, **w_kw),
                pl.BlockSpec((H, Out_p), inv_map, **w_kw),
                pl.BlockSpec((1, Out_p), inv_map, **w_kw),
            ],
            out_specs=pl.BlockSpec((block_batch, Out_p), lambda i: (i, 0)),
        ),
        compiler_params=pltpu.CompilerParams(
            dimension_semantics=("parallel",),
            vmem_limit_bytes=vmem_limit,
        ),
    )


# --------------------------------------------------------------------------
# One-time parameter preparation (hoisted out of the per-call path).
# --------------------------------------------------------------------------
def prepare_params(w1, b1, w2, b2, *, compute_dtype=jnp.float32):
    """Cast weights to compute_dtype (bf16 = native MXU dtype on all gens),
    keep biases in f32, and zero-pad ONLY the output lane dim to a multiple
    of 128 so output stores are lane-dense (unmasked vst)."""
    In, H = w1.shape
    H2, Out = w2.shape
    assert H2 == H and b1.shape == (H,) and b2.shape == (Out,)
    Out_p = _round_up(Out, _LANE)
    # TODO(synk): for realistic widths on v6e/v7x, pad H/Out to multiples of 256
    # (2x256x256 MXU); 128 is already optimal on v5e and at this demo size.
    w1_p = w1.astype(compute_dtype)
    b1_p = b1.astype(jnp.float32).reshape(1, H)
    w2_p = w2.astype(compute_dtype)
    b2_p = b2.astype(jnp.float32)
    if Out_p != Out:
        w2_p = jnp.pad(w2_p, ((0, 0), (0, Out_p - Out)))   # zero cols -> exact math
        b2_p = jnp.pad(b2_p, ((0, Out_p - Out),))
    b2_p = b2_p.reshape(1, Out_p)
    return dict(w1=w1_p, b1=b1_p, w2=w2_p, b2=b2_p,
                in_features=In, hidden=H, out_features=Out, out_padded=Out_p,
                compute_dtype=compute_dtype)


def mlp_forward(x, params, *, block_batch=None):
    """x: (B, In) -> (B, Out).  `params` comes from prepare_params()."""
    B, In = x.shape
    assert In == params["in_features"]
    H, Out, Out_p = params["hidden"], params["out_features"], params["out_padded"]
    out_dtype = x.dtype

    # ---- Batch tiling: multiples of 8 sublane rows, up to 512 rows/tile.
    # One grid step per REAL tile only (B=8 -> block_batch=8, grid=(1,)); no
    # zero-padded steps are manufactured.  (Use block_batch~256 on v7x at
    # moderate B if you want both TCs busy; irrelevant at a single step.)
    if block_batch is None:
        block_batch = min(512, _round_up(B, _SUBLANE))
    block_batch = min(_round_up(max(block_batch, _SUBLANE), _SUBLANE),
                      _round_up(B, _SUBLANE))
    B_p = _round_up(B, block_batch)
    grid_steps = B_p // block_batch

    x_c = x.astype(params["compute_dtype"])
    if B_p != B:
        x_c = jnp.pad(x_c, ((0, B_p - B), (0, 0)))   # garbage rows sliced off below

    # ---- VMEM budget: x/out tiles (double-buffered) + weights/biases + f32
    # intermediates, 2x headroom, clamped to the per-generation budget.
    w_bytes = jnp.dtype(params["compute_dtype"]).itemsize
    o_bytes = jnp.dtype(out_dtype).itemsize
    vmem_request = (
        2 * block_batch * In * w_bytes           # x tiles (2 bufs)
        + 2 * block_batch * Out_p * o_bytes      # out tiles (2 bufs)
        + 2 * (In * H + H * Out_p) * w_bytes     # weights (worst case 2 bufs)
        + 2 * (H + Out_p) * 4                    # f32 biases
        + block_batch * (H + Out_p) * 4          # f32 hidden / pre-store activations
    )
    vmem_limit = _pick_vmem_limit(2 * vmem_request)

    args = (x_c, params["w1"], params["b1"], params["w2"], params["b2"])
    call_kwargs = dict(grid_steps=grid_steps, block_batch=block_batch, In=In,
                       H=H, Out_p=Out_p, B_p=B_p, out_dtype=out_dtype,
                       vmem_limit=vmem_limit)
    try:
        out_p = _build_call(single_buffer_weights=True, **call_kwargs)(*args)
    except Exception:
        # Some jax versions reject pipeline_mode=pl.Buffered(1); fall back to
        # default double-buffered weights (2x weight VMEM, same results).
        out_p = _build_call(single_buffer_weights=False, **call_kwargs)(*args)

    # Slice away batch padding and output-lane padding.
    return out_p[:B, :Out]


if __name__ == "__main__":
    # Small shapes consistent with the module: input_size=32, hidden=64, out=16
    batch, input_size, hidden_size, output_size = 8, 32, 64, 16

    key = jax.random.PRNGKey(0)
    kx, kw1, kb1, kw2, kb2 = jax.random.split(key, 5)

    x = jax.random.normal(kx, (batch, input_size), dtype=jnp.float32)

    # Deterministic parameter init (PyTorch-Linear-style uniform bounds),
    # stored pre-transposed as (in_features, out_features).
    lim1 = 1.0 / (input_size ** 0.5)
    lim2 = 1.0 / (hidden_size ** 0.5)
    w1 = jax.random.uniform(kw1, (input_size, hidden_size),
                            minval=-lim1, maxval=lim1, dtype=jnp.float32)
    b1 = jax.random.uniform(kb1, (hidden_size,),
                            minval=-lim1, maxval=lim1, dtype=jnp.float32)
    w2 = jax.random.uniform(kw2, (hidden_size, output_size),
                            minval=-lim2, maxval=lim2, dtype=jnp.float32)
    b2 = jax.random.uniform(kb2, (output_size,),
                            minval=-lim2, maxval=lim2, dtype=jnp.float32)

    # Reference in plain JAX (same math, same layout as the PyTorch module).
    ref = jnp.maximum(x @ w1 + b1, 0.0) @ w2 + b2

    # ---- f32 path: bit-comparable to the PyTorch module. -----------------
    params_f32 = prepare_params(w1, b1, w2, b2, compute_dtype=jnp.float32)
    out = jax.block_until_ready(mlp_forward(x, params_f32))
    assert out.shape == (batch, output_size)
    assert jnp.allclose(out, ref, atol=1e-4, rtol=1e-4)

    # ---- bf16 MXU path: native MXU dtype on v5e/v6e/v7x (looser tolerance).
    params_bf16 = prepare_params(w1, b1, w2, b2, compute_dtype=jnp.bfloat16)
    out_bf16 = jax.block_until_ready(mlp_forward(x, params_bf16))
    assert out_bf16.shape == (batch, output_size)
    assert jnp.allclose(out_bf16, ref, atol=5e-2, rtol=5e-2)

    print("KERNEL_OK")
</pallas_src>

<mosaic_0001>
module attributes {stable_mosaic.version = 11 : i64} {
  func.func @mlp_kernel(%arg0: i32, %arg1: memref<8x32xf32, #tpu.memory_space<vmem>>, %arg2: memref<32x64xf32, #tpu.memory_space<vmem>>, %arg3: memref<1x64xf32, #tpu.memory_space<vmem>>, %arg4: memref<64x128xf32, #tpu.memory_space<vmem>>, %arg5: memref<1x128xf32, #tpu.memory_space<vmem>>, %arg6: memref<8x128xf32, #tpu.memory_space<vmem>>) attributes {dimension_semantics = [#tpu.dimension_semantics<parallel>], iteration_bounds = array<i64: 1>, scalar_prefetch = 0 : i64, scratch_operands = 0 : i64, tpu.core_type = #tpu.core_type<tc>, window_params = [{transform_indices = @transform_0, window_bounds = array<i64: 8, 32>}, {pipeline_mode = #tpu.pipeline_mode<synchronous>, transform_indices = @transform_1, window_bounds = array<i64: 32, 64>}, {pipeline_mode = #tpu.pipeline_mode<synchronous>, transform_indices = @transform_2, window_bounds = array<i64: 1, 64>}, {pipeline_mode = #tpu.pipeline_mode<synchronous>, transform_indices = @transform_3, window_bounds = array<i64: 64, 128>}, {pipeline_mode = #tpu.pipeline_mode<synchronous>, transform_indices = @transform_4, window_bounds = array<i64: 1, 128>}, {transform_indices = @transform_5, window_bounds = array<i64: 8, 128>}]} {
    %c0 = arith.constant 0 : index
    %c0_0 = arith.constant 0 : index
    %0 = vector.load %arg1[%c0, %c0_0] : memref<8x32xf32, #tpu.memory_space<vmem>>, vector<8x32xf32>
    %c0_1 = arith.constant 0 : index
    %c0_2 = arith.constant 0 : index
    %1 = vector.load %arg2[%c0_1, %c0_2] : memref<32x64xf32, #tpu.memory_space<vmem>>, vector<32x64xf32>
    %cst = arith.constant dense<0.000000e+00> : vector<8x64xf32>
    %2 = tpu.matmul %0, %1, %cst {dimension_numbers = #tpu.dot_dimension_numbers<[1], [0], [0], [1], [0, 0, 1, 1], [], []>} : vector<8x32xf32>, vector<32x64xf32>, vector<8x64xf32> -> vector<8x64xf32>
    %c0_3 = arith.constant 0 : index
    %c0_4 = arith.constant 0 : index
    %3 = vector.load %arg3[%c0_3, %c0_4] : memref<1x64xf32, #tpu.memory_space<vmem>>, vector<1x64xf32>
    %4 = vector.broadcast %3 : vector<1x64xf32> to vector<8x64xf32>
    %5 = arith.addf %2, %4 : vector<8x64xf32>
    %cst_5 = arith.constant 0.000000e+00 : f32
    %6 = vector.broadcast %cst_5 : f32 to vector<8x64xf32>
    %7 = arith.maximumf %5, %6 : vector<8x64xf32>
    %c0_6 = arith.constant 0 : index
    %c0_7 = arith.constant 0 : index
    %8 = vector.load %arg4[%c0_6, %c0_7] : memref<64x128xf32, #tpu.memory_space<vmem>>, vector<64x128xf32>
    %cst_8 = arith.constant dense<0.000000e+00> : vector<8x128xf32>
    %9 = tpu.matmul %7, %8, %cst_8 {dimension_numbers = #tpu.dot_dimension_numbers<[1], [0], [0], [1], [0, 0, 1, 1], [], []>} : vector<8x64xf32>, vector<64x128xf32>, vector<8x128xf32> -> vector<8x128xf32>
    %c0_9 = arith.constant 0 : index
    %c0_10 = arith.constant 0 : index
    %10 = vector.load %arg5[%c0_9, %c0_10] : memref<1x128xf32, #tpu.memory_space<vmem>>, vector<1x128xf32>
    %11 = vector.broadcast %10 : vector<1x128xf32> to vector<8x128xf32>
    %12 = arith.addf %9, %11 : vector<8x128xf32>
    %c0_11 = arith.constant 0 : index
    %c0_12 = arith.constant 0 : index
    %13 = vector.load %arg6[%c0_11, %c0_12] : memref<8x128xf32, #tpu.memory_space<vmem>>, vector<8x128xf32>
    tpu.vector_store %arg6[%c0_11, %c0_12], %12 {strides = array<i32>} : memref<8x128xf32, #tpu.memory_space<vmem>>, vector<8x128xf32>,
    return
  }
  func.func @transform_0(%arg0: i32) -> (i32, i32) {
    %c0_i32 = arith.constant 0 : i32
    %c0_i32_0 = arith.constant 0 : i32
    return %arg0, %c0_i32 : i32, i32
  }
  func.func @transform_1(%arg0: i32) -> (i32, i32) {
    %c0_i32 = arith.constant 0 : i32
    %c0_i32_0 = arith.constant 0 : i32
    %c0_i32_1 = arith.constant 0 : i32
    return %c0_i32, %c0_i32_0 : i32, i32
  }
  func.func @transform_2(%arg0: i32) -> (i32, i32) {
    %c0_i32 = arith.constant 0 : i32
    %c0_i32_0 = arith.constant 0 : i32
    %c0_i32_1 = arith.constant 0 : i32
    return %c0_i32, %c0_i32_0 : i32, i32
  }
  func.func @transform_3(%arg0: i32) -> (i32, i32) {
    %c0_i32 = arith.constant 0 : i32
    %c0_i32_0 = arith.constant 0 : i32
    %c0_i32_1 = arith.constant 0 : i32
    return %c0_i32, %c0_i32_0 : i32, i32
  }
  func.func @transform_4(%arg0: i32) -> (i32, i32) {
    %c0_i32 = arith.constant 0 : i32
    %c0_i32_0 = arith.constant 0 : i32
    %c0_i32_1 = arith.constant 0 : i32
    return %c0_i32, %c0_i32_0 : i32, i32
  }
  func.func @transform_5(%arg0: i32) -> (i32, i32) {
    %c0_i32 = arith.constant 0 : i32
    %c0_i32_0 = arith.constant 0 : i32
    return %arg0, %c0_i32 : i32, i32
  }
}

module attributes {stable_mosaic.version = 11 : i64} {
  func.func @mlp_kernel(%arg0: i32, %arg1: memref<8x32xf32, #tpu.memory_space<vmem>>, %arg2: memref<32x64xf32, #tpu.memory_space<vmem>>, %arg3: memref<1x64xf32, #tpu.memory_space<vmem>>, %arg4: memref<64x128xf32, #tpu.memory_space<vmem>>, %arg5: memref<1x128xf32, #tpu.memory_space<vmem>>, %arg6: memref<8x128xf32, #tpu.memory_space<vmem>>) attributes {dimension_semantics = [#tpu.dimension_semantics<parallel>], iteration_bounds = array<i64: 1>, scalar_prefetch = 0 : i64, scratch_operands = 0 : i64, tpu.core_type = #tpu.core_type<tc>, window_params = [{transform_indices = @transform_0, window_bounds = array<i64: 8, 32>}, {pipeline_mode = #tpu.pipeline_mode<synchronous>, transform_indices = @transform_1, window_bounds = array<i64: 32, 64>}, {pipeline_mode = #tpu.pipeline_mode<synchronous>, transform_indices = @transform_2, window_bounds = array<i64: 1, 64>}, {pipeline_mode = #tpu.pipeline_mode<synchronous>, transform_indices = @transform_3, window_bounds = array<i64: 64, 128>}, {pipeline_mode = #tpu.pipeline_mode<synchronous>, transform_indices = @transform_4, window_bounds = array<i64: 1, 128>}, {transform_indices = @transform_5, window_bounds = array<i64: 8, 128>}]} {
    %c0 = arith.constant 0 : index
    %c0_0 = arith.constant 0 : index
    %0 = vector.load %arg1[%c0, %c0_0] : memref<8x32xf32, #tpu.memory_space<vmem>>, vector<8x32xf32>
    %c0_1 = arith.constant 0 : index
    %c0_2 = arith.constant 0 : index
    %1 = vector.load %arg2[%c0_1, %c0_2] : memref<32x64xf32, #tpu.memory_space<vmem>>, vector<32x64xf32>
    %cst = arith.constant dense<0.000000e+00> : vector<8x64xf32>
    %2 = tpu.matmul %0, %1, %cst {dimension_numbers = #tpu.dot_dimension_numbers<[1], [0], [0], [1], [0, 0, 1, 1], [], []>} : vector<8x32xf32>, vector<32x64xf32>, vector<8x64xf32> -> vector<8x64xf32>
    %c0_3 = arith.constant 0 : index
    %c0_4 = arith.constant 0 : index
    %3 = vector.load %arg3[%c0_3, %c0_4] : memref<1x64xf32, #tpu.memory_space<vmem>>, vector<1x64xf32>
    %4 = vector.broadcast %3 : vector<1x64xf32> to vector<8x64xf32>
    %5 = arith.addf %2, %4 : vector<8x64xf32>
    %cst_5 = arith.constant 0.000000e+00 : f32
    %6 = vector.broadcast %cst_5 : f32 to vector<8x64xf32>
    %7 = arith.maximumf %5, %6 : vector<8x64xf32>
    %c0_6 = arith.constant 0 : index
    %c0_7 = arith.constant 0 : index
    %8 = vector.load %arg4[%c0_6, %c0_7] : memref<64x128xf32, #tpu.memory_space<vmem>>, vector<64x128xf32>
    %cst_8 = arith.constant dense<0.000000e+00> : vector<8x128xf32>
    %9 = tpu.matmul %7, %8, %cst_8 {dimension_numbers = #tpu.dot_dimension_numbers<[1], [0], [0], [1], [0, 0, 1, 1], [], []>} : vector<8x64xf32>, vector<64x128xf32>, vector<8x128xf32> -> vector<8x128xf32>
    %c0_9 = arith.constant 0 : index
    %c0_10 = arith.constant 0 : index
    %10 = vector.load %arg5[%c0_9, %c0_10] : memref<1x128xf32, #tpu.memory_space<vmem>>, vector<1x128xf32>
    %11 = vector.broadcast %10 : vector<1x128xf32> to vector<8x128xf32>
    %12 = arith.addf %9, %11 : vector<8x128xf32>
    %c0_11 = arith.constant 0 : index
    %c0_12 = arith.constant 0 : index
    %13 = vector.load %arg6[%c0_11, %c0_12] : memref<8x128xf32, #tpu.memory_space<vmem>>, vector<8x128xf32>
    tpu.vector_store %arg6[%c0_11, %c0_12], %12 {strides = array<i32>} : memref<8x128xf32, #tpu.memory_space<vmem>>, vector<8x128xf32>,
    return
  }
  func.func @transform_0(%arg0: i32) -> (i32, i32) {
    %c0_i32 = arith.constant 0 : i32
    %c0_i32_0 = arith.constant 0 : i32
    return %arg0, %c0_i32 : i32, i32
  }
  func.func @transform_1(%arg0: i32) -> (i32, i32) {
    %c0_i32 = arith.constant 0 : i32
    %c0_i32_0 = arith.constant 0 : i32
    %c0_i32_1 = arith.constant 0 : i32
    return %c0_i32, %c0_i32_0 : i32, i32
  }
  func.func @transform_2(%arg0: i32) -> (i32, i32) {
    %c0_i32 = arith.constant 0 : i32
    %c0_i32_0 = arith.constant 0 : i32
    %c0_i32_1 = arith.constant 0 : i32
    return %c0_i32, %c0_i32_0 : i32, i32
  }
  func.func @transform_3(%arg0: i32) -> (i32, i32) {
    %c0_i32 = arith.constant 0 : i32
    %c0_i32_0 = arith.constant 0 : i32
    %c0_i32_1 = arith.constant 0 : i32
    return %c0_i32, %c0_i32_0 : i32, i32
  }
  func.func @transform_4(%arg0: i32) -> (i32, i32) {
    %c0_i32 = arith.constant 0 : i32
    %c0_i32_0 = arith.constant 0 : i32
    %c0_i32_1 = arith.constant 0 : i32
    return %c0_i32, %c0_i32_0 : i32, i32
  }
  func.func @transform_5(%arg0: i32) -> (i32, i32) {
    %c0_i32 = arith.constant 0 : i32
    %c0_i32_0 = arith.constant 0 : i32
    return %arg0, %c0_i32 : i32, i32
  }
}

</mosaic_0001>

<llo_original>
// kernel: tpu_custom_call.1
$region0: #{tpu_custom_call.1}
  #allocation0 [shape = 'u32[]', space=smem, size = 0x4, offset = 0x4, fixed_abs, tag = 'smem constant byte address 0x4 - core index']
  #allocation1 [shape = 'u32[144,128]{1,0:T(1,128)}', space=vmem, size = 0x12000, scoped, tag = 'internal scratch']
  %s0 = inlined_call_operand.hbm [shape: f32[8,32], index: 0, kind: input, shape index: {}]
  %s1 = inlined_call_operand.hbm [shape: f32[32,64], index: 1, kind: input, shape index: {}]
  %s2 = inlined_call_operand.vmem [shape: f32[1,64], index: 2, kind: input, shape index: {}]
  %s3 = inlined_call_operand.hbm [shape: f32[64,128], index: 3, kind: input, shape index: {}]
  %s4 = inlined_call_operand.vmem [shape: f32[1,128], index: 4, kind: input, shape index: {}]
  %s5 = inlined_call_operand.hbm [shape: f32[8,128], index: 5, kind: output, shape index: {}]
  %s6 = sld [smem:[#allocation0]]
  $region42: #{tpu_custom_call.1} parent=0
    _
  %s8 = ssub.s32 1, %s6
  %s9 = scalar_select 0, %s8, %s6
  $region1: #{tpu_custom_call.1} parent=0
    #allocation2 [shape = 'u8[4096]{0}', space=vmem, size = 0x1000, scoped, tag = 'input window, operand 0, single buffered']
    #allocation3 [shape = 's32[1]{0}', space=sflag, size = 0x4, scoped, tag = 'scoped memory for tpu_custom_call.1']
    #allocation4 [shape = 's32[1]{0}', space=sflag, size = 0x4, scoped, tag = 'scoped memory for tpu_custom_call.1']
    #allocation5 [shape = 'u8[16384]{0}', space=vmem, size = 0x4000, scoped, tag = 'input window, operand 1, single buffered']
    #allocation6 [shape = 's32[1]{0}', space=sflag, size = 0x4, scoped, tag = 'scoped memory for tpu_custom_call.1']
    #allocation7 [shape = 'u8[32768]{0}', space=vmem, size = 0x8000, scoped, tag = 'input window, operand 3, single buffered']
    #allocation8 [shape = 'u8[4096]{0}', space=vmem, size = 0x1000, scoped, tag = 'output window, operand 0, single buffered']
    %10 = vsyncpa [#allocation3], 0
    %11 = vsyncpa [#allocation6], 0
    %12 = vsyncpa [#allocation4], 0
    // Predicated region
    $region2: #{tpu_custom_call.1} parent=1 // pred_check
      _
    $region3: #{tpu_custom_call.1} parent=1 // pred_check_branch
      %14 = sbr.rel (0) target = $region5
    $region4: #{tpu_custom_call.1} parent=1 // pred_region
      %s16 = ssub.s32 128, 128
      %17 = vsyncadd [#allocation3], %s16
      %s19 = sshll.u32 [#allocation2], 4
      %s20 = int_to_ptr.vmem [resolvable:$true] %s19
      %22 = dma.hbm_to_vmem [thread:$0]  %s0, 128, %s20, [#allocation3]
    $region5: #{tpu_custom_call.1} parent=1 // pred_fallthru
      _
    // Predicated region
    $region6: #{tpu_custom_call.1} parent=1 // pred_check
      _
    $region7: #{tpu_custom_call.1} parent=1 // pred_check_branch
      %24 = sbr.rel (0) target = $region9
    $region8: #{tpu_custom_call.1} parent=1 // pred_region
      %s26 = ssub.s32 512, 512
      %27 = vsyncadd [#allocation6], %s26
      %s28 = sshll.u32 [#allocation5], 4
      %s29 = int_to_ptr.vmem [resolvable:$true] %s28
      %34 = dma.hbm_to_vmem [thread:$0]  %s1, 512, %s29, [#allocation6], 128, 128, 8
    $region9: #{tpu_custom_call.1} parent=1 // pred_fallthru
      _
    // Predicated region
    $region10: #{tpu_custom_call.1} parent=1 // pred_check
      _
    $region11: #{tpu_custom_call.1} parent=1 // pred_check_branch
      %36 = sbr.rel (0) target = $region13
    $region12: #{tpu_custom_call.1} parent=1 // pred_region
      _
    $region13: #{tpu_custom_call.1} parent=1 // pred_fallthru
      _
    // Predicated region
    $region14: #{tpu_custom_call.1} parent=1 // pred_check
      _
    $region15: #{tpu_custom_call.1} parent=1 // pred_check_branch
      %38 = sbr.rel (0) target = $region17
    $region16: #{tpu_custom_call.1} parent=1 // pred_region
      %s40 = ssub.s32 1024, 1024
      %41 = vsyncadd [#allocation6], %s40
      %s42 = sshll.u32 [#allocation7], 4
      %s43 = int_to_ptr.vmem [resolvable:$true] %s42
      %48 = dma.hbm_to_vmem [thread:$0]  %s3, 1024, %s43, [#allocation6], 128, 128, 8
    $region17: #{tpu_custom_call.1} parent=1 // pred_fallthru
      _
    // Predicated region
    $region18: #{tpu_custom_call.1} parent=1 // pred_check
      _
    $region19: #{tpu_custom_call.1} parent=1 // pred_check_branch
      %50 = sbr.rel (0) target = $region21
    $region20: #{tpu_custom_call.1} parent=1 // pred_region
      _
    $region21: #{tpu_custom_call.1} parent=1 // pred_fallthru
      _
    // Predicated region
    $region22: #{tpu_custom_call.1} parent=1 // pred_check
      _
    $region23: #{tpu_custom_call.1} parent=1 // pred_check_branch
      %52 = sbr.rel (0) target = $region25
    $region24: #{tpu_custom_call.1} parent=1 // pred_region
      %53 = dma.done [#allocation3], 128
    $region25: #{tpu_custom_call.1} parent=1 // pred_fallthru
      _
    // Predicated region
    $region26: #{tpu_custom_call.1} parent=1 // pred_check
      _
    $region27: #{tpu_custom_call.1} parent=1 // pred_check_branch
      %55 = sbr.rel (0) target = $region29
    $region28: #{tpu_custom_call.1} parent=1 // pred_region
      %56 = dma.done [#allocation6], 512
    $region29: #{tpu_custom_call.1} parent=1 // pred_fallthru
      _
    // Predicated region
    $region30: #{tpu_custom_call.1} parent=1 // pred_check
      _
    $region31: #{tpu_custom_call.1} parent=1 // pred_check_branch
      %58 = sbr.rel (0) target = $region33
    $region32: #{tpu_custom_call.1} parent=1 // pred_region
      %59 = dma.done [#allocation6], 1024
    $region33: #{tpu_custom_call.1} parent=1 // pred_fallthru
      _
    %v60 = vld [vmem:[#allocation2] sm:$0xff]
    %v61 = vld [vmem:[#allocation5] sm:$0xff]
    %v62 = vld [vmem:[#allocation5 + $0x8] sm:$0xff]
    %v63 = vld [vmem:[#allocation5 + $0x10] sm:$0xff]
    %v64 = vld [vmem:[#allocation5 + $0x18] sm:$0xff]
    %v65 = vld [vmem:[%s2] sm:$0x1]
    %v67 = vlaneseq
    %v68 = vshrl.u32 %v67, 7
    %v69 = vsub.s32 0, %v68
    %v70 = vrot.slane %v65, %v69
    %vm72 = vcmask 261120
    %v74 = vsel %vm72, %v60, 0
    %76 = vmatprep.subr.mxu0 0.0
    %77 = vmatpush1.msra.mxu0 0.0
    %78 = vmatprep.subr.mxu0 0.0
    %79 = vmatpush1.msra.mxu0 0.0
    %80 = vmatprep.subr.mxu0 0.0
    %81 = vmatpush1.msra.mxu0 0.0
    %82 = vmatprep.subr.mxu0 0.0
    %83 = vmatpush1.msra.mxu0 0.0
    %84 = vmatprep.subr.mxu0 0.0
    %85 = vmatpush1.msra.mxu0 0.0
    %86 = vmatprep.subr.mxu0 0.0
    %87 = vmatpush1.msra.mxu0 0.0
    %88 = vmatprep.subr.mxu0 0.0
    %89 = vmatpush1.msra.mxu0 0.0
    %90 = vmatprep.subr.mxu0 0.0
    %91 = vmatpush1.msra.mxu0 0.0
    %92 = vmatprep.subr.mxu0 0.0
    %93 = vmatpush1.msra.mxu0 0.0
    %94 = vmatprep.subr.mxu0 0.0
    %95 = vmatpush1.msra.mxu0 0.0
    %96 = vmatprep.subr.mxu0 0.0
    %97 = vmatpush1.msra.mxu0 0.0
    %98 = vmatprep.subr.mxu0 0.0
    %99 = vmatpush1.msra.mxu0 0.0
    %100 = vmatprep.subr.mxu0 0.0
    %101 = vmatpush1.msra.mxu0 %v64
    %102 = vmatprep.subr.mxu0 0.0
    %103 = vmatpush1.msra.mxu0 %v63
    %104 = vmatprep.subr.mxu0 0.0
    %105 = vmatpush1.msra.mxu0 %v62
    %106 = vmatprep.subr.mxu0 0.0
    %107 = vmatpush1.msra.mxu0 %v61
    %108 = vmatprep.subr.mxu0 0.0
    %109 = vmatpush2.msra.mxu0 0.0
    %110 = vmatprep.subr.mxu0 0.0
    %111 = vmatpush2.msra.mxu0 0.0
    %112 = vmatprep.subr.mxu0 0.0
    %113 = vmatpush2.msra.mxu0 0.0
    %114 = vmatprep.subr.mxu0 0.0
    %115 = vmatpush2.msra.mxu0 0.0
    %116 = vmatprep.subr.mxu0 0.0
    %117 = vmatpush2.msra.mxu0 0.0
    %118 = vmatprep.subr.mxu0 0.0
    %119 = vmatpush2.msra.mxu0 0.0
    %120 = vmatprep.subr.mxu0 0.0
    %121 = vmatpush2.msra.mxu0 0.0
    %122 = vmatprep.subr.mxu0 0.0
    %123 = vmatpush2.msra.mxu0 0.0
    %124 = vmatprep.subr.mxu0 0.0
    %125 = vmatpush2.msra.mxu0 0.0
    %126 = vmatprep.subr.mxu0 0.0
    %127 = vmatpush2.msra.mxu0 0.0
    %128 = vmatprep.subr.mxu0 0.0
    %129 = vmatpush2.msra.mxu0 0.0
    %130 = vmatprep.subr.mxu0 0.0
    %131 = vmatpush2.msra.mxu0 0.0
    %132 = vmatprep.subr.mxu0 0.0
    %133 = vmatpush2.msra.mxu0 0.0
    %134 = vmatprep.subr.mxu0 0.0
    %135 = vmatpush2.msra.mxu0 0.0
    %136 = vmatprep.subr.mxu0 0.0
    %137 = vmatpush2.msra.mxu0 0.0
    %138 = vmatprep.subr.mxu0 0.0
    %139 = vmatpush2.msra.mxu0 0.0
    %140 = vmatprep.mubr.f32.mxu0 0.0
    %141 = vmatmul.mubr.f32.gmra.mxu0 %v74
    %v142 = vpop.f32.mrf.mxu0
    %v143 = vadd.f32 %v70, %v142
    %v144 = vpop.f32.mrf.mxu0
    %145 = vdwg.mxu0
    %v146 = vmax.f32 %v143, 0.0
    %v147 = vld [vmem:[#allocation7] sm:$0xff]
    %v148 = vld [vmem:[#allocation7 + $0x8] sm:$0xff]
    %v149 = vld [vmem:[#allocation7 + $0x10] sm:$0xff]
    %v150 = vld [vmem:[#allocation7 + $0x18] sm:$0xff]
    %v151 = vld [vmem:[#allocation7 + $0x20] sm:$0xff]
    %v152 = vld [vmem:[#allocation7 + $0x28] sm:$0xff]
    %v153 = vld [vmem:[#allocation7 + $0x30] sm:$0xff]
    %v154 = vld [vmem:[#allocation7 + $0x38] sm:$0xff]
    %v155 = vld [vmem:[%s4] sm:$0x1]
    %v157 = vlaneseq
    %v158 = vshrl.u32 %v157, 7
    %v159 = vsub.s32 0, %v158
    %v160 = vrot.slane %v155, %v159
    %vm162 = vcmask 523264
    %v164 = vsel %vm162, %v146, 0
    %166 = vmatprep.subr.mxu0 0.0
    %167 = vmatpush1.msra.mxu0 0.0
    %168 = vmatprep.subr.mxu0 0.0
    %169 = vmatpush1.msra.mxu0 0.0
    %170 = vmatprep.subr.mxu0 0.0
    %171 = vmatpush1.msra.mxu0 0.0
    %172 = vmatprep.subr.mxu0 0.0
    %173 = vmatpush1.msra.mxu0 0.0
    %174 = vmatprep.subr.mxu0 0.0
    %175 = vmatpush1.msra.mxu0 0.0
    %176 = vmatprep.subr.mxu0 0.0
    %177 = vmatpush1.msra.mxu0 0.0
    %178 = vmatprep.subr.mxu0 0.0
    %179 = vmatpush1.msra.mxu0 0.0
    %180 = vmatprep.subr.mxu0 0.0
    %181 = vmatpush1.msra.mxu0 0.0
    %182 = vmatprep.subr.mxu0 0.0
    %183 = vmatpush1.msra.mxu0 %v154
    %184 = vmatprep.subr.mxu0 0.0
    %185 = vmatpush1.msra.mxu0 %v153
    %186 = vmatprep.subr.mxu0 0.0
    %187 = vmatpush1.msra.mxu0 %v152
    %188 = vmatprep.subr.mxu0 0.0
    %189 = vmatpush1.msra.mxu0 %v151
    %190 = vmatprep.subr.mxu0 0.0
    %191 = vmatpush1.msra.mxu0 %v150
    %192 = vmatprep.subr.mxu0 0.0
    %193 = vmatpush1.msra.mxu0 %v149
    %194 = vmatprep.subr.mxu0 0.0
    %195 = vmatpush1.msra.mxu0 %v148
    %196 = vmatprep.subr.mxu0 0.0
    %197 = vmatpush1.msra.mxu0 %v147
    %198 = vmatprep.subr.mxu0 0.0
    %199 = vmatpush2.msra.mxu0 0.0
    %200 = vmatprep.subr.mxu0 0.0
    %201 = vmatpush2.msra.mxu0 0.0
    %202 = vmatprep.subr.mxu0 0.0
    %203 = vmatpush2.msra.mxu0 0.0
    %204 = vmatprep.subr.mxu0 0.0
    %205 = vmatpush2.msra.mxu0 0.0
    %206 = vmatprep.subr.mxu0 0.0
    %207 = vmatpush2.msra.mxu0 0.0
    %208 = vmatprep.subr.mxu0 0.0
    %209 = vmatpush2.msra.mxu0 0.0
    %210 = vmatprep.subr.mxu0 0.0
    %211 = vmatpush2.msra.mxu0 0.0
    %212 = vmatprep.subr.mxu0 0.0
    %213 = vmatpush2.msra.mxu0 0.0
    %214 = vmatprep.subr.mxu0 0.0
    %215 = vmatpush2.msra.mxu0 0.0
    %216 = vmatprep.subr.mxu0 0.0
    %217 = vmatpush2.msra.mxu0 0.0
    %218 = vmatprep.subr.mxu0 0.0
    %219 = vmatpush2.msra.mxu0 0.0
    %220 = vmatprep.subr.mxu0 0.0
    %221 = vmatpush2.msra.mxu0 0.0
    %222 = vmatprep.subr.mxu0 0.0
    %223 = vmatpush2.msra.mxu0 0.0
    %224 = vmatprep.subr.mxu0 0.0
    %225 = vmatpush2.msra.mxu0 0.0
    %226 = vmatprep.subr.mxu0 0.0
    %227 = vmatpush2.msra.mxu0 0.0
    %228 = vmatprep.subr.mxu0 0.0
    %229 = vmatpush2.msra.mxu0 0.0
    %230 = vmatprep.mubr.f32.mxu0 0.0
    %231 = vmatmul.mubr.f32.gmra.mxu0 %v164
    %v232 = vpop.f32.mrf.mxu0
    %v233 = vadd.f32 %v160, %v232
    %v234 = vpop.f32.mrf.mxu0
    %235 = vdwg.mxu0
    %236 = vst [vmem:[#allocation8] sm:$0xff] %v233
    // Predicated region
    $region34: #{tpu_custom_call.1} parent=1 // pred_check
      _
    $region35: #{tpu_custom_call.1} parent=1 // pred_check_branch
      %238 = sbr.rel (0) target = $region37
    $region36: #{tpu_custom_call.1} parent=1 // pred_region
      %s240 = ssub.s32 128, 128
      %241 = vsyncadd [#allocation4], %s240
      %s243 = sshll.u32 [#allocation8], 4
      %s244 = int_to_ptr.vmem [resolvable:$true] %s243
      %246 = dma.vmem_to_hbm [thread:$0]  %s244, 128, %s5, [#allocation4]
    $region37: #{tpu_custom_call.1} parent=1 // pred_fallthru
      _
    // Predicated region
    $region38: #{tpu_custom_call.1} parent=1 // pred_check
      _
    $region39: #{tpu_custom_call.1} parent=1 // pred_check_branch
      %248 = sbr.rel (0) target = $region41
    $region40: #{tpu_custom_call.1} parent=1 // pred_region
      %249 = dma.done [#allocation4], 128
    $region41: #{tpu_custom_call.1} parent=1 // pred_fallthru
      _
    %250 = vsyncpa [#allocation3], 1
    %251 = vsyncpa [#allocation6], 1
    %252 = vsyncpa [#allocation4], 1

// kernel: tpu_custom_call.1
$region0: #{tpu_custom_call.1}
  #allocation0 [shape = 'u32[]', space=smem, size = 0x4, offset = 0x4, fixed_abs, tag = 'smem constant byte address 0x4 - core index']
  #allocation1 [shape = 'u32[144,128]{1,0:T(1,128)}', space=vmem, size = 0x12000, scoped, tag = 'internal scratch']
  %s0 = inlined_call_operand.hbm [shape: f32[8,32], index: 0, kind: input, shape index: {}]
  %s1 = inlined_call_operand.hbm [shape: f32[32,64], index: 1, kind: input, shape index: {}]
  %s2 = inlined_call_operand.vmem [shape: f32[1,64], index: 2, kind: input, shape index: {}]
  %s3 = inlined_call_operand.hbm [shape: f32[64,128], index: 3, kind: input, shape index: {}]
  %s4 = inlined_call_operand.vmem [shape: f32[1,128], index: 4, kind: input, shape index: {}]
  %s5 = inlined_call_operand.hbm [shape: f32[8,128], index: 5, kind: output, shape index: {}]
  %s6 = sld [smem:[#allocation0]]
  $region42: #{tpu_custom_call.1} parent=0
    _
  %s8 = ssub.s32 1, %s6
  %s9 = scalar_select 0, %s8, %s6
  $region1: #{tpu_custom_call.1} parent=0
    #allocation2 [shape = 'u8[4096]{0}', space=vmem, size = 0x1000, scoped, tag = 'input window, operand 0, single buffered']
    #allocation3 [shape = 's32[1]{0}', space=sflag, size = 0x4, scoped, tag = 'scoped memory for tpu_custom_call.1']
    #allocation4 [shape = 's32[1]{0}', space=sflag, size = 0x4, scoped, tag = 'scoped memory for tpu_custom_call.1']
    #allocation5 [shape = 'u8[16384]{0}', space=vmem, size = 0x4000, scoped, tag = 'input window, operand 1, single buffered']
    #allocation6 [shape = 's32[1]{0}', space=sflag, size = 0x4, scoped, tag = 'scoped memory for tpu_custom_call.1']
    #allocation7 [shape = 'u8[32768]{0}', space=vmem, size = 0x8000, scoped, tag = 'input window, operand 3, single buffered']
    #allocation8 [shape = 'u8[4096]{0}', space=vmem, size = 0x1000, scoped, tag = 'output window, operand 0, single buffered']
    %10 = vsyncpa [#allocation3], 0
    %11 = vsyncpa [#allocation6], 0
    %12 = vsyncpa [#allocation4], 0
    // Predicated region
    $region2: #{tpu_custom_call.1} parent=1 // pred_check
      _
    $region3: #{tpu_custom_call.1} parent=1 // pred_check_branch
      %14 = sbr.rel (0) target = $region5
    $region4: #{tpu_custom_call.1} parent=1 // pred_region
      %s16 = ssub.s32 128, 128
      %17 = vsyncadd [#allocation3], %s16
      %s19 = sshll.u32 [#allocation2], 4
      %s20 = int_to_ptr.vmem [resolvable:$true] %s19
      %22 = dma.hbm_to_vmem [thread:$0]  %s0, 128, %s20, [#allocation3]
    $region5: #{tpu_custom_call.1} parent=1 // pred_fallthru
      _
    // Predicated region
    $region6: #{tpu_custom_call.1} parent=1 // pred_check
      _
    $region7: #{tpu_custom_call.1} parent=1 // pred_check_branch
      %24 = sbr.rel (0) target = $region9
    $region8: #{tpu_custom_call.1} parent=1 // pred_region
      %s26 = ssub.s32 512, 512
      %27 = vsyncadd [#allocation6], %s26
      %s28 = sshll.u32 [#allocation5], 4
      %s29 = int_to_ptr.vmem [resolvable:$true] %s28
      %34 = dma.hbm_to_vmem [thread:$0]  %s1, 512, %s29, [#allocation6], 128, 128, 8
    $region9: #{tpu_custom_call.1} parent=1 // pred_fallthru
      _
    // Predicated region
    $region10: #{tpu_custom_call.1} parent=1 // pred_check
      _
    $region11: #{tpu_custom_call.1} parent=1 // pred_check_branch
      %36 = sbr.rel (0) target = $region13
    $region12: #{tpu_custom_call.1} parent=1 // pred_region
      _
    $region13: #{tpu_custom_call.1} parent=1 // pred_fallthru
      _
    // Predicated region
    $region14: #{tpu_custom_call.1} parent=1 // pred_check
      _
    $region15: #{tpu_custom_call.1} parent=1 // pred_check_branch
      %38 = sbr.rel (0) target = $region17
    $region16: #{tpu_custom_call.1} parent=1 // pred_region
      %s40 = ssub.s32 1024, 1024
      %41 = vsyncadd [#allocation6], %s40
      %s42 = sshll.u32 [#allocation7], 4
      %s43 = int_to_ptr.vmem [resolvable:$true] %s42
      %48 = dma.hbm_to_vmem [thread:$0]  %s3, 1024, %s43, [#allocation6], 128, 128, 8
    $region17: #{tpu_custom_call.1} parent=1 // pred_fallthru
      _
    // Predicated region
    $region18: #{tpu_custom_call.1} parent=1 // pred_check
      _
    $region19: #{tpu_custom_call.1} parent=1 // pred_check_branch
      %50 = sbr.rel (0) target = $region21
    $region20: #{tpu_custom_call.1} parent=1 // pred_region
      _
    $region21: #{tpu_custom_call.1} parent=1 // pred_fallthru
      _
    // Predicated region
    $region22: #{tpu_custom_call.1} parent=1 // pred_check
      _
    $region23: #{tpu_custom_call.1} parent=1 // pred_check_branch
      %52 = sbr.rel (0) target = $region25
    $region24: #{tpu_custom_call.1} parent=1 // pred_region
      %53 = dma.done [#allocation3], 128
    $region25: #{tpu_custom_call.1} parent=1 // pred_fallthru
      _
    // Predicated region
    $region26: #{tpu_custom_call.1} parent=1 // pred_check
      _
    $region27: #{tpu_custom_call.1} parent=1 // pred_check_branch
      %55 = sbr.rel (0) target = $region29
    $region28: #{tpu_custom_call.1} parent=1 // pred_region
      %56 = dma.done [#allocation6], 512
    $region29: #{tpu_custom_call.1} parent=1 // pred_fallthru
      _
    // Predicated region
    $region30: #{tpu_custom_call.1} parent=1 // pred_check
      _
    $region31: #{tpu_custom_call.1} parent=1 // pred_check_branch
      %58 = sbr.rel (0) target = $region33
    $region32: #{tpu_custom_call.1} parent=1 // pred_region
      %59 = dma.done [#allocation6], 1024
    $region33: #{tpu_custom_call.1} parent=1 // pred_fallthru
      _
    %v60 = vld [vmem:[#allocation2] sm:$0xff]
    %v61 = vld [vmem:[#allocation5] sm:$0xff]
    %v62 = vld [vmem:[#allocation5 + $0x8] sm:$0xff]
    %v63 = vld [vmem:[#allocation5 + $0x10] sm:$0xff]
    %v64 = vld [vmem:[#allocation5 + $0x18] sm:$0xff]
    %v65 = vld [vmem:[%s2] sm:$0x1]
    %v67 = vlaneseq
    %v68 = vshrl.u32 %v67, 7
    %v69 = vsub.s32 0, %v68
    %v70 = vrot.slane %v65, %v69
    %vm72 = vcmask 261120
    %v74 = vsel %vm72, %v60, 0
    %76 = vmatprep.subr.mxu0 0.0
    %77 = vmatpush1.msra.mxu0 0.0
    %78 = vmatprep.subr.mxu0 0.0
    %79 = vmatpush1.msra.mxu0 0.0
    %80 = vmatprep.subr.mxu0 0.0
    %81 = vmatpush1.msra.mxu0 0.0
    %82 = vmatprep.subr.mxu0 0.0
    %83 = vmatpush1.msra.mxu0 0.0
    %84 = vmatprep.subr.mxu0 0.0
    %85 = vmatpush1.msra.mxu0 0.0
    %86 = vmatprep.subr.mxu0 0.0
    %87 = vmatpush1.msra.mxu0 0.0
    %88 = vmatprep.subr.mxu0 0.0
    %89 = vmatpush1.msra.mxu0 0.0
    %90 = vmatprep.subr.mxu0 0.0
    %91 = vmatpush1.msra.mxu0 0.0
    %92 = vmatprep.subr.mxu0 0.0
    %93 = vmatpush1.msra.mxu0 0.0
    %94 = vmatprep.subr.mxu0 0.0
    %95 = vmatpush1.msra.mxu0 0.0
    %96 = vmatprep.subr.mxu0 0.0
    %97 = vmatpush1.msra.mxu0 0.0
    %98 = vmatprep.subr.mxu0 0.0
    %99 = vmatpush1.msra.mxu0 0.0
    %100 = vmatprep.subr.mxu0 0.0
    %101 = vmatpush1.msra.mxu0 %v64
    %102 = vmatprep.subr.mxu0 0.0
    %103 = vmatpush1.msra.mxu0 %v63
    %104 = vmatprep.subr.mxu0 0.0
    %105 = vmatpush1.msra.mxu0 %v62
    %106 = vmatprep.subr.mxu0 0.0
    %107 = vmatpush1.msra.mxu0 %v61
    %108 = vmatprep.subr.mxu0 0.0
    %109 = vmatpush2.msra.mxu0 0.0
    %110 = vmatprep.subr.mxu0 0.0
    %111 = vmatpush2.msra.mxu0 0.0
    %112 = vmatprep.subr.mxu0 0.0
    %113 = vmatpush2.msra.mxu0 0.0
    %114 = vmatprep.subr.mxu0 0.0
    %115 = vmatpush2.msra.mxu0 0.0
    %116 = vmatprep.subr.mxu0 0.0
    %117 = vmatpush2.msra.mxu0 0.0
    %118 = vmatprep.subr.mxu0 0.0
    %119 = vmatpush2.msra.mxu0 0.0
    %120 = vmatprep.subr.mxu0 0.0
    %121 = vmatpush2.msra.mxu0 0.0
    %122 = vmatprep.subr.mxu0 0.0
    %123 = vmatpush2.msra.mxu0 0.0
    %124 = vmatprep.subr.mxu0 0.0
    %125 = vmatpush2.msra.mxu0 0.0
    %126 = vmatprep.subr.mxu0 0.0
    %127 = vmatpush2.msra.mxu0 0.0
    %128 = vmatprep.subr.mxu0 0.0
    %129 = vmatpush2.msra.mxu0 0.0
    %130 = vmatprep.subr.mxu0 0.0
    %131 = vmatpush2.msra.mxu0 0.0
    %132 = vmatprep.subr.mxu0 0.0
    %133 = vmatpush2.msra.mxu0 0.0
    %134 = vmatprep.subr.mxu0 0.0
    %135 = vmatpush2.msra.mxu0 0.0
    %136 = vmatprep.subr.mxu0 0.0
    %137 = vmatpush2.msra.mxu0 0.0
    %138 = vmatprep.subr.mxu0 0.0
    %139 = vmatpush2.msra.mxu0 0.0
    %140 = vmatprep.mubr.f32.mxu0 0.0
    %141 = vmatmul.mubr.f32.gmra.mxu0 %v74
    %v142 = vpop.f32.mrf.mxu0
    %v143 = vadd.f32 %v70, %v142
    %v144 = vpop.f32.mrf.mxu0
    %145 = vdwg.mxu0
    %v146 = vmax.f32 %v143, 0.0
    %v147 = vld [vmem:[#allocation7] sm:$0xff]
    %v148 = vld [vmem:[#allocation7 + $0x8] sm:$0xff]
    %v149 = vld [vmem:[#allocation7 + $0x10] sm:$0xff]
    %v150 = vld [vmem:[#allocation7 + $0x18] sm:$0xff]
    %v151 = vld [vmem:[#allocation7 + $0x20] sm:$0xff]
    %v152 = vld [vmem:[#allocation7 + $0x28] sm:$0xff]
    %v153 = vld [vmem:[#allocation7 + $0x30] sm:$0xff]
    %v154 = vld [vmem:[#allocation7 + $0x38] sm:$0xff]
    %v155 = vld [vmem:[%s4] sm:$0x1]
    %v157 = vlaneseq
    %v158 = vshrl.u32 %v157, 7
    %v159 = vsub.s32 0, %v158
    %v160 = vrot.slane %v155, %v159
    %vm162 = vcmask 523264
    %v164 = vsel %vm162, %v146, 0
    %166 = vmatprep.subr.mxu0 0.0
    %167 = vmatpush1.msra.mxu0 0.0
    %168 = vmatprep.subr.mxu0 0.0
    %169 = vmatpush1.msra.mxu0 0.0
    %170 = vmatprep.subr.mxu0 0.0
    %171 = vmatpush1.msra.mxu0 0.0
    %172 = vmatprep.subr.mxu0 0.0
    %173 = vmatpush1.msra.mxu0 0.0
    %174 = vmatprep.subr.mxu0 0.0
    %175 = vmatpush1.msra.mxu0 0.0
    %176 = vmatprep.subr.mxu0 0.0
    %177 = vmatpush1.msra.mxu0 0.0
    %178 = vmatprep.subr.mxu0 0.0
    %179 = vmatpush1.msra.mxu0 0.0
    %180 = vmatprep.subr.mxu0 0.0
    %181 = vmatpush1.msra.mxu0 0.0
    %182 = vmatprep.subr.mxu0 0.0
    %183 = vmatpush1.msra.mxu0 %v154
    %184 = vmatprep.subr.mxu0 0.0
    %185 = vmatpush1.msra.mxu0 %v153
    %186 = vmatprep.subr.mxu0 0.0
    %187 = vmatpush1.msra.mxu0 %v152
    %188 = vmatprep.subr.mxu0 0.0
    %189 = vmatpush1.msra.mxu0 %v151
    %190 = vmatprep.subr.mxu0 0.0
    %191 = vmatpush1.msra.mxu0 %v150
    %192 = vmatprep.subr.mxu0 0.0
    %193 = vmatpush1.msra.mxu0 %v149
    %194 = vmatprep.subr.mxu0 0.0
    %195 = vmatpush1.msra.mxu0 %v148
    %196 = vmatprep.subr.mxu0 0.0
    %197 = vmatpush1.msra.mxu0 %v147
    %198 = vmatprep.subr.mxu0 0.0
    %199 = vmatpush2.msra.mxu0 0.0
    %200 = vmatprep.subr.mxu0 0.0
    %201 = vmatpush2.msra.mxu0 0.0
    %202 = vmatprep.subr.mxu0 0.0
    %203 = vmatpush2.msra.mxu0 0.0
    %204 = vmatprep.subr.mxu0 0.0
    %205 = vmatpush2.msra.mxu0 0.0
    %206 = vmatprep.subr.mxu0 0.0
    %207 = vmatpush2.msra.mxu0 0.0
    %208 = vmatprep.subr.mxu0 0.0
    %209 = vmatpush2.msra.mxu0 0.0
    %210 = vmatprep.subr.mxu0 0.0
    %211 = vmatpush2.msra.mxu0 0.0
    %212 = vmatprep.subr.mxu0 0.0
    %213 = vmatpush2.msra.mxu0 0.0
    %214 = vmatprep.subr.mxu0 0.0
    %215 = vmatpush2.msra.mxu0 0.0
    %216 = vmatprep.subr.mxu0 0.0
    %217 = vmatpush2.msra.mxu0 0.0
    %218 = vmatprep.subr.mxu0 0.0
    %219 = vmatpush2.msra.mxu0 0.0
    %220 = vmatprep.subr.mxu0 0.0
    %221 = vmatpush2.msra.mxu0 0.0
    %222 = vmatprep.subr.mxu0 0.0
    %223 = vmatpush2.msra.mxu0 0.0
    %224 = vmatprep.subr.mxu0 0.0
    %225 = vmatpush2.msra.mxu0 0.0
    %226 = vmatprep.subr.mxu0 0.0
    %227 = vmatpush2.msra.mxu0 0.0
    %228 = vmatprep.subr.mxu0 0.0
    %229 = vmatpush2.msra.mxu0 0.0
    %230 = vmatprep.mubr.f32.mxu0 0.0
    %231 = vmatmul.mubr.f32.gmra.mxu0 %v164
    %v232 = vpop.f32.mrf.mxu0
    %v233 = vadd.f32 %v160, %v232
    %v234 = vpop.f32.mrf.mxu0
    %235 = vdwg.mxu0
    %236 = vst [vmem:[#allocation8] sm:$0xff] %v233
    // Predicated region
    $region34: #{tpu_custom_call.1} parent=1 // pred_check
      _
    $region35: #{tpu_custom_call.1} parent=1 // pred_check_branch
      %238 = sbr.rel (0) target = $region37
    $region36: #{tpu_custom_call.1} parent=1 // pred_region
      %s240 = ssub.s32 128, 128
      %241 = vsyncadd [#allocation4], %s240
      %s243 = sshll.u32 [#allocation8], 4
      %s244 = int_to_ptr.vmem [resolvable:$true] %s243
      %246 = dma.vmem_to_hbm [thread:$0]  %s244, 128, %s5, [#allocation4]
    $region37: #{tpu_custom_call.1} parent=1 // pred_fallthru
      _
    // Predicated region
    $region38: #{tpu_custom_call.1} parent=1 // pred_check
      _
    $region39: #{tpu_custom_call.1} parent=1 // pred_check_branch
      %248 = sbr.rel (0) target = $region41
    $region40: #{tpu_custom_call.1} parent=1 // pred_region
      %249 = dma.done [#allocation4], 128
    $region41: #{tpu_custom_call.1} parent=1 // pred_fallthru
      _
    %250 = vsyncpa [#allocation3], 1
    %251 = vsyncpa [#allocation6], 1
    %252 = vsyncpa [#allocation4], 1

</llo_original>
